<compile_context>
chip_gen: v7x
topology: tpu7x:2x2x1
jax: 0.10.0
libtpu: 0.0.40
codegen_flags: <defaults>
</compile_context>

<pallas_src>
import functools
import math

import jax
import jax.numpy as jnp
from jax.experimental import pallas as pl
from jax.experimental.pallas import tpu as pltpu


_TARGET_STEP_BYTES = 4 << 20  # aim for >= ~4 MiB of input per grid step


# --------------------------------------------------------------------------- #
# Kernels
# --------------------------------------------------------------------------- #
def _layernorm_kernel(x_ref, a_ref, b_ref, o_ref, *, eps):
    """Plain path: one row per normalization group. x_ref: (T, F), a/b: (1, F)."""
    x = x_ref[...].astype(jnp.float32)
    n = x.shape[-1]
    mean = jnp.sum(x, axis=-1, keepdims=True) * (1.0 / n)
    c = x - mean                                   # two-pass: centered in-tile
    denom = float((n - 1) if n > 1 else 1)         # unbiased (ddof=1), guard n==1
    var = jnp.sum(c * c, axis=-1, keepdims=True) * (1.0 / denom)
    inv = jax.lax.rsqrt(var + eps)
    y = a_ref[...].astype(jnp.float32) * (c * inv) + b_ref[...].astype(jnp.float32)
    o_ref[...] = y.astype(o_ref.dtype)


def _layernorm_kernel_packed(x_ref, a_ref, b_ref, m_ref, o_ref, *, eps, feat, nseg):
    """Lane-packed path: nseg original rows of width `feat` live side-by-side in
    the 128-lane dimension. Per-row stats via masked (segmented) reductions.
    x_ref: (T, nseg*feat), a/b: (1, nseg*feat), m_ref: (nseg, nseg*feat) one-hot."""
    x = x_ref[...].astype(jnp.float32)
    masks = m_ref[...].astype(jnp.float32)
    inv_n = 1.0 / feat
    denom = float((feat - 1) if feat > 1 else 1)

    # Per-segment mean, broadcast back onto the segment's lanes.
    mean = jnp.zeros_like(x)
    for j in range(nseg):                          # nseg <= 16, fully unrolled
        mj = masks[j][None, :]                     # (1, kF) 0/1 mask
        sj = jnp.sum(x * mj, axis=-1, keepdims=True)
        mean = mean + (sj * inv_n) * mj

    c = x - mean
    cc = c * c

    # Per-segment unbiased variance -> rsqrt, broadcast back onto the segment.
    inv = jnp.zeros_like(x)
    for j in range(nseg):
        mj = masks[j][None, :]
        vj = jnp.sum(cc * mj, axis=-1, keepdims=True) * (1.0 / denom)
        inv = inv + jax.lax.rsqrt(vj + eps) * mj

    y = a_ref[...].astype(jnp.float32) * (c * inv) + b_ref[...].astype(jnp.float32)
    o_ref[...] = y.astype(o_ref.dtype)


# --------------------------------------------------------------------------- #
# Sizing helpers
# --------------------------------------------------------------------------- #
def _round_up(x, m):
    return -(-x // m) * m


def _num_tensorcores():
    """Best-effort TensorCore-per-chip count; default 1 (v5e/v6e behaviour)."""
    try:
        info = pltpu.get_tpu_info()
        for attr in ("num_cores", "num_tensorcores", "tensorcores_per_chip",
                     "cores_per_chip"):
            v = getattr(info, attr, None)
            if v:
                return max(1, int(v))
    except Exception:
        pass
    try:
        kind = (jax.devices()[0].device_kind or "").lower()
        if "v7" in kind or "7x" in kind:
            return 2
    except Exception:
        pass
    return 1


def _vmem_capacity_bytes(num_cores):
    try:
        v = int(pltpu.get_tpu_info().vmem_capacity_bytes)
    except Exception:
        v = 64 << 20
    v = min(v, 128 << 20)
    if num_cores >= 2:
        v = min(v, 64 << 20)  # v7x: 64 MiB per TensorCore
    return v


def _pick_tile_rows(rows, feat, dtype, vmem_bytes, num_cores, f32_temps=3):
    """Biggest row tile that (a) keeps double-buffered in/out blocks plus f32
    temporaries inside VMEM and (b) moves at least ~_TARGET_STEP_BYTES per step."""
    itemsize = jnp.dtype(dtype).itemsize
    sublane = {1: 32, 2: 16}.get(itemsize, 8)
    row_bytes = feat * itemsize
    # 2x-buffered input + 2x-buffered output + f32_temps full-tile f32 temporaries.
    per_row_bytes = feat * (4 * itemsize + 4 * f32_temps)
    budget = vmem_bytes // 3
    if vmem_bytes >= (100 << 20) and row_bytes >= (32 << 10):
        # v5e/v6e with very large F: bigger DMAs, VMEM is plentiful.
        budget = int(vmem_bytes * 0.45)
    cap = max(1024, _TARGET_STEP_BYTES // max(row_bytes, 1))
    t = max(sublane, min(budget // max(per_row_bytes, 1), cap))
    if t >= rows:
        t = rows                       # single full-dim block (always a legal block)
    else:
        t = max(sublane, (t // sublane) * sublane)
    # Only split a fits-in-one-tile problem when the chip has >1 TensorCore.
    if num_cores >= 2 and rows > sublane:
        steps = -(-rows // t)
        want = min(2 * num_cores, max(2, rows // sublane))  # even, ideally >= 4
        if steps < want:
            t = max(sublane, _round_up(-(-rows // want), sublane))
            t = min(t, rows)
    return int(t)


def _vmem_limit_bytes(tile_rows, feat, dtype, vmem_bytes, f32_temps=3):
    itemsize = jnp.dtype(dtype).itemsize
    need = (
        2 * 2 * tile_rows * feat * itemsize    # double-buffered in + out blocks
        + f32_temps * tile_rows * feat * 4     # in-kernel f32 temporaries
        + 8 * feat * 4                         # a_2 / b_2 / segment-mask blocks
        + (2 << 20)                            # headroom
    )
    return int(min(max(need, 32 << 20), int(vmem_bytes * 0.9)))


# --------------------------------------------------------------------------- #
# Wrapper
# --------------------------------------------------------------------------- #
def layer_norm(x, a_2, b_2, eps=1e-6, *, tile_rows=None):
    """x: (..., F); a_2, b_2: (F,). Returns same shape/dtype as x."""
    orig_shape = x.shape
    feat = orig_shape[-1]
    rows = int(math.prod(orig_shape[:-1])) if len(orig_shape) > 1 else 1
    x2 = x.reshape(rows, feat)

    num_cores = _num_tensorcores()
    vmem_bytes = _vmem_capacity_bytes(num_cores)
    itemsize = jnp.dtype(x.dtype).itemsize
    param_bytes = jnp.dtype(a_2.dtype).itemsize
    cost = pl.CostEstimate(
        flops=8 * rows * feat,
        transcendentals=rows,
        bytes_accessed=2 * rows * feat * itemsize + 2 * feat * param_bytes,
    )
    common_params = dict(dimension_semantics=("parallel",))

    # Lane-packing: for narrow features pack k = 128 // F rows into the 128-lane
    # dimension so every HBM load/store is a full 128-lane vector (no vst.msk).
    k = 1
    if feat < 128 and 128 % feat == 0:
        k = 128 // feat
        if rows % k != 0 or k > 16:
            k = 1  # TODO(synk): pad rows / handle k > 16 to cover these shapes too.
    # TODO(synk): F > 128 with F % 128 != 0 still uses masked partial stores;
    # pad features to a lane multiple for those shapes.

    if k > 1:
        packed_rows = rows // k
        kf = k * feat
        xp = x2.reshape(packed_rows, kf)
        ap = jnp.tile(a_2.reshape(-1), k).reshape(1, kf)
        bp = jnp.tile(b_2.reshape(-1), k).reshape(1, kf)
        lane_seg = jnp.arange(kf) // feat
        masks = (jnp.arange(k)[:, None] == lane_seg[None, :]).astype(jnp.float32)

        tr = tile_rows or _pick_tile_rows(packed_rows, kf, x.dtype, vmem_bytes,
                                          num_cores, f32_temps=5)
        vmem_limit = _vmem_limit_bytes(tr, kf, x.dtype, vmem_bytes, f32_temps=5)

        out = pl.pallas_call(
            functools.partial(_layernorm_kernel_packed, eps=eps, feat=feat, nseg=k),
            out_shape=jax.ShapeDtypeStruct((packed_rows, kf), x.dtype),
            grid_spec=pltpu.PrefetchScalarGridSpec(
                num_scalar_prefetch=0,
                grid=(pl.cdiv(packed_rows, tr),),
                in_specs=[
                    pl.BlockSpec((tr, kf), lambda i: (i, 0)),
                    pl.BlockSpec((1, kf), lambda i: (0, 0)),
                    pl.BlockSpec((1, kf), lambda i: (0, 0)),
                    pl.BlockSpec((k, kf), lambda i: (0, 0)),
                ],
                out_specs=pl.BlockSpec((tr, kf), lambda i: (i, 0)),
            ),
            compiler_params=pltpu.CompilerParams(
                vmem_limit_bytes=vmem_limit, **common_params),
            cost_estimate=cost,
        )(xp, ap, bp, masks)
        return out.reshape(orig_shape)

    # Plain path: one normalization group per row, full-F blocks, no host padding
    # (the partial last block is clipped by Pallas; tail writes are masked).
    a2 = a_2.reshape(1, feat)
    b2 = b_2.reshape(1, feat)
    tr = tile_rows or _pick_tile_rows(rows, feat, x.dtype, vmem_bytes, num_cores)
    vmem_limit = _vmem_limit_bytes(tr, feat, x.dtype, vmem_bytes)

    out = pl.pallas_call(
        functools.partial(_layernorm_kernel, eps=eps),
        out_shape=jax.ShapeDtypeStruct((rows, feat), x.dtype),
        grid_spec=pltpu.PrefetchScalarGridSpec(
            num_scalar_prefetch=0,
            grid=(pl.cdiv(rows, tr),),
            in_specs=[
                pl.BlockSpec((tr, feat), lambda i: (i, 0)),
                pl.BlockSpec((1, feat), lambda i: (0, 0)),
                pl.BlockSpec((1, feat), lambda i: (0, 0)),
            ],
            out_specs=pl.BlockSpec((tr, feat), lambda i: (i, 0)),
        ),
        compiler_params=pltpu.CompilerParams(
            vmem_limit_bytes=vmem_limit, **common_params),
        cost_estimate=cost,
    )(x2, a2, b2)
    return out.reshape(orig_shape)


if __name__ == "__main__":
    key = jax.random.PRNGKey(0)
    batch, seq, hidden = 2, 8, 32

    x = jax.random.normal(key, (batch, seq, hidden), dtype=jnp.float32)
    # Deterministic parameter init matching nn.Parameter(torch.ones/zeros(features))
    a_2 = jnp.ones((hidden,), dtype=jnp.float32)
    b_2 = jnp.zeros((hidden,), dtype=jnp.float32)

    out = layer_norm(x, a_2, b_2, eps=1e-6)
    out = jax.block_until_ready(out)

    # Reference in plain JAX (unbiased std, matching torch.Tensor.std / the module)
    mean = jnp.mean(x, axis=-1, keepdims=True)
    std = jnp.std(x, axis=-1, keepdims=True, ddof=1)
    ref = a_2 * (x - mean) / jnp.sqrt(std**2 + 1e-6) + b_2
    assert jnp.allclose(out, ref, atol=1e-5, rtol=1e-5), "mismatch vs reference"

    print("KERNEL_OK")
</pallas_src>

<mosaic_0001>
module attributes {stable_mosaic.version = 11 : i64} {
  func.func @_layernorm_kernel_packed(%arg0: i32, %arg1: memref<4x128xf32, #tpu.memory_space<vmem>>, %arg2: memref<1x128xf32, #tpu.memory_space<vmem>>, %arg3: memref<1x128xf32, #tpu.memory_space<vmem>>, %arg4: memref<4x128xf32, #tpu.memory_space<vmem>>, %arg5: memref<4x128xf32, #tpu.memory_space<vmem>>) attributes {dimension_semantics = [#tpu.dimension_semantics<parallel>], iteration_bounds = array<i64: 1>, scalar_prefetch = 0 : i64, scratch_operands = 0 : i64, tpu.core_type = #tpu.core_type<tc>, window_params = [{transform_indices = @transform_0, window_bounds = array<i64: 4, 128>}, {pipeline_mode = #tpu.pipeline_mode<synchronous>, transform_indices = @transform_1, window_bounds = array<i64: 1, 128>}, {pipeline_mode = #tpu.pipeline_mode<synchronous>, transform_indices = @transform_2, window_bounds = array<i64: 1, 128>}, {pipeline_mode = #tpu.pipeline_mode<synchronous>, transform_indices = @transform_3, window_bounds = array<i64: 4, 128>}, {transform_indices = @transform_4, window_bounds = array<i64: 4, 128>}]} {
    %c0 = arith.constant 0 : index
    %c0_0 = arith.constant 0 : index
    %0 = vector.load %arg1[%c0, %c0_0] : memref<4x128xf32, #tpu.memory_space<vmem>>, vector<4x128xf32>
    %c0_1 = arith.constant 0 : index
    %c0_2 = arith.constant 0 : index
    %1 = vector.load %arg4[%c0_1, %c0_2] : memref<4x128xf32, #tpu.memory_space<vmem>>, vector<4x128xf32>
    %cst = arith.constant 0.000000e+00 : f32
    %2 = vector.broadcast %cst : f32 to vector<4x128xf32>
    %3 = vector.extract_strided_slice %1 {offsets = [0, 0], sizes = [1, 128], strides = [1, 1]} : vector<4x128xf32> to vector<1x128xf32>
    %4 = vector.shape_cast %3 : vector<1x128xf32> to vector<128xf32>
    %5 = vector.shape_cast %4 : vector<128xf32> to vector<1x128xf32>
    %6 = vector.broadcast %5 : vector<1x128xf32> to vector<4x128xf32>
    %7 = arith.mulf %0, %6 : vector<4x128xf32>
    %cst_3 = arith.constant dense<0.000000e+00> : vector<4xf32>
    %8 = vector.multi_reduction <add>, %7, %cst_3 [1] : vector<4x128xf32> to vector<4xf32>
    %9 = vector.shape_cast %8 : vector<4xf32> to vector<4x1xf32>
    %cst_4 = arith.constant 3.125000e-02 : f32
    %10 = vector.broadcast %cst_4 : f32 to vector<4x1xf32>
    %11 = arith.mulf %9, %10 : vector<4x1xf32>
    %12 = vector.broadcast %11 : vector<4x1xf32> to vector<4x128xf32>
    %13 = vector.broadcast %5 : vector<1x128xf32> to vector<4x128xf32>
    %14 = arith.mulf %12, %13 : vector<4x128xf32>
    %15 = arith.addf %2, %14 : vector<4x128xf32>
    %16 = vector.extract_strided_slice %1 {offsets = [1, 0], sizes = [1, 128], strides = [1, 1]} : vector<4x128xf32> to vector<1x128xf32>
    %17 = vector.shape_cast %16 : vector<1x128xf32> to vector<128xf32>
    %18 = vector.shape_cast %17 : vector<128xf32> to vector<1x128xf32>
    %19 = vector.broadcast %18 : vector<1x128xf32> to vector<4x128xf32>
    %20 = arith.mulf %0, %19 : vector<4x128xf32>
    %cst_5 = arith.constant dense<0.000000e+00> : vector<4xf32>
    %21 = vector.multi_reduction <add>, %20, %cst_5 [1] : vector<4x128xf32> to vector<4xf32>
    %22 = vector.shape_cast %21 : vector<4xf32> to vector<4x1xf32>
    %cst_6 = arith.constant 3.125000e-02 : f32
    %23 = vector.broadcast %cst_6 : f32 to vector<4x1xf32>
    %24 = arith.mulf %22, %23 : vector<4x1xf32>
    %25 = vector.broadcast %24 : vector<4x1xf32> to vector<4x128xf32>
    %26 = vector.broadcast %18 : vector<1x128xf32> to vector<4x128xf32>
    %27 = arith.mulf %25, %26 : vector<4x128xf32>
    %28 = arith.addf %15, %27 : vector<4x128xf32>
    %29 = vector.extract_strided_slice %1 {offsets = [2, 0], sizes = [1, 128], strides = [1, 1]} : vector<4x128xf32> to vector<1x128xf32>
    %30 = vector.shape_cast %29 : vector<1x128xf32> to vector<128xf32>
    %31 = vector.shape_cast %30 : vector<128xf32> to vector<1x128xf32>
    %32 = vector.broadcast %31 : vector<1x128xf32> to vector<4x128xf32>
    %33 = arith.mulf %0, %32 : vector<4x128xf32>
    %cst_7 = arith.constant dense<0.000000e+00> : vector<4xf32>
    %34 = vector.multi_reduction <add>, %33, %cst_7 [1] : vector<4x128xf32> to vector<4xf32>
    %35 = vector.shape_cast %34 : vector<4xf32> to vector<4x1xf32>
    %cst_8 = arith.constant 3.125000e-02 : f32
    %36 = vector.broadcast %cst_8 : f32 to vector<4x1xf32>
    %37 = arith.mulf %35, %36 : vector<4x1xf32>
    %38 = vector.broadcast %37 : vector<4x1xf32> to vector<4x128xf32>
    %39 = vector.broadcast %31 : vector<1x128xf32> to vector<4x128xf32>
    %40 = arith.mulf %38, %39 : vector<4x128xf32>
    %41 = arith.addf %28, %40 : vector<4x128xf32>
    %42 = vector.extract_strided_slice %1 {offsets = [3, 0], sizes = [1, 128], strides = [1, 1]} : vector<4x128xf32> to vector<1x128xf32>
    %43 = vector.shape_cast %42 : vector<1x128xf32> to vector<128xf32>
    %44 = vector.shape_cast %43 : vector<128xf32> to vector<1x128xf32>
    %45 = vector.broadcast %44 : vector<1x128xf32> to vector<4x128xf32>
    %46 = arith.mulf %0, %45 : vector<4x128xf32>
    %cst_9 = arith.constant dense<0.000000e+00> : vector<4xf32>
    %47 = vector.multi_reduction <add>, %46, %cst_9 [1] : vector<4x128xf32> to vector<4xf32>
    %48 = vector.shape_cast %47 : vector<4xf32> to vector<4x1xf32>
    %cst_10 = arith.constant 3.125000e-02 : f32
    %49 = vector.broadcast %cst_10 : f32 to vector<4x1xf32>
    %50 = arith.mulf %48, %49 : vector<4x1xf32>
    %51 = vector.broadcast %50 : vector<4x1xf32> to vector<4x128xf32>
    %52 = vector.broadcast %44 : vector<1x128xf32> to vector<4x128xf32>
    %53 = arith.mulf %51, %52 : vector<4x128xf32>
    %54 = arith.addf %41, %53 : vector<4x128xf32>
    %55 = arith.subf %0, %54 : vector<4x128xf32>
    %56 = arith.mulf %55, %55 : vector<4x128xf32>
    %cst_11 = arith.constant 0.000000e+00 : f32
    %57 = vector.broadcast %cst_11 : f32 to vector<4x128xf32>
    %58 = vector.extract_strided_slice %1 {offsets = [0, 0], sizes = [1, 128], strides = [1, 1]} : vector<4x128xf32> to vector<1x128xf32>
    %59 = vector.shape_cast %58 : vector<1x128xf32> to vector<128xf32>
    %60 = vector.shape_cast %59 : vector<128xf32> to vector<1x128xf32>
    %61 = vector.broadcast %60 : vector<1x128xf32> to vector<4x128xf32>
    %62 = arith.mulf %56, %61 : vector<4x128xf32>
    %cst_12 = arith.constant dense<0.000000e+00> : vector<4xf32>
    %63 = vector.multi_reduction <add>, %62, %cst_12 [1] : vector<4x128xf32> to vector<4xf32>
    %64 = vector.shape_cast %63 : vector<4xf32> to vector<4x1xf32>
    %cst_13 = arith.constant 0.0322580636 : f32
    %65 = vector.broadcast %cst_13 : f32 to vector<4x1xf32>
    %66 = arith.mulf %64, %65 : vector<4x1xf32>
    %cst_14 = arith.constant 9.99999997E-7 : f32
    %67 = vector.broadcast %cst_14 : f32 to vector<4x1xf32>
    %68 = arith.addf %66, %67 : vector<4x1xf32>
    %69 = math.rsqrt %68 : vector<4x1xf32>
    %70 = vector.broadcast %69 : vector<4x1xf32> to vector<4x128xf32>
    %71 = vector.broadcast %60 : vector<1x128xf32> to vector<4x128xf32>
    %72 = arith.mulf %70, %71 : vector<4x128xf32>
    %73 = arith.addf %57, %72 : vector<4x128xf32>
    %74 = vector.extract_strided_slice %1 {offsets = [1, 0], sizes = [1, 128], strides = [1, 1]} : vector<4x128xf32> to vector<1x128xf32>
    %75 = vector.shape_cast %74 : vector<1x128xf32> to vector<128xf32>
    %76 = vector.shape_cast %75 : vector<128xf32> to vector<1x128xf32>
    %77 = vector.broadcast %76 : vector<1x128xf32> to vector<4x128xf32>
    %78 = arith.mulf %56, %77 : vector<4x128xf32>
    %cst_15 = arith.constant dense<0.000000e+00> : vector<4xf32>
    %79 = vector.multi_reduction <add>, %78, %cst_15 [1] : vector<4x128xf32> to vector<4xf32>
    %80 = vector.shape_cast %79 : vector<4xf32> to vector<4x1xf32>
    %cst_16 = arith.constant 0.0322580636 : f32
    %81 = vector.broadcast %cst_16 : f32 to vector<4x1xf32>
    %82 = arith.mulf %80, %81 : vector<4x1xf32>
    %cst_17 = arith.constant 9.99999997E-7 : f32
    %83 = vector.broadcast %cst_17 : f32 to vector<4x1xf32>
    %84 = arith.addf %82, %83 : vector<4x1xf32>
    %85 = math.rsqrt %84 : vector<4x1xf32>
    %86 = vector.broadcast %85 : vector<4x1xf32> to vector<4x128xf32>
    %87 = vector.broadcast %76 : vector<1x128xf32> to vector<4x128xf32>
    %88 = arith.mulf %86, %87 : vector<4x128xf32>
    %89 = arith.addf %73, %88 : vector<4x128xf32>
    %90 = vector.extract_strided_slice %1 {offsets = [2, 0], sizes = [1, 128], strides = [1, 1]} : vector<4x128xf32> to vector<1x128xf32>
    %91 = vector.shape_cast %90 : vector<1x128xf32> to vector<128xf32>
    %92 = vector.shape_cast %91 : vector<128xf32> to vector<1x128xf32>
    %93 = vector.broadcast %92 : vector<1x128xf32> to vector<4x128xf32>
    %94 = arith.mulf %56, %93 : vector<4x128xf32>
    %cst_18 = arith.constant dense<0.000000e+00> : vector<4xf32>
    %95 = vector.multi_reduction <add>, %94, %cst_18 [1] : vector<4x128xf32> to vector<4xf32>
    %96 = vector.shape_cast %95 : vector<4xf32> to vector<4x1xf32>
    %cst_19 = arith.constant 0.0322580636 : f32
    %97 = vector.broadcast %cst_19 : f32 to vector<4x1xf32>
    %98 = arith.mulf %96, %97 : vector<4x1xf32>
    %cst_20 = arith.constant 9.99999997E-7 : f32
    %99 = vector.broadcast %cst_20 : f32 to vector<4x1xf32>
    %100 = arith.addf %98, %99 : vector<4x1xf32>
    %101 = math.rsqrt %100 : vector<4x1xf32>
    %102 = vector.broadcast %101 : vector<4x1xf32> to vector<4x128xf32>
    %103 = vector.broadcast %92 : vector<1x128xf32> to vector<4x128xf32>
    %104 = arith.mulf %102, %103 : vector<4x128xf32>
    %105 = arith.addf %89, %104 : vector<4x128xf32>
    %106 = vector.extract_strided_slice %1 {offsets = [3, 0], sizes = [1, 128], strides = [1, 1]} : vector<4x128xf32> to vector<1x128xf32>
    %107 = vector.shape_cast %106 : vector<1x128xf32> to vector<128xf32>
    %108 = vector.shape_cast %107 : vector<128xf32> to vector<1x128xf32>
    %109 = vector.broadcast %108 : vector<1x128xf32> to vector<4x128xf32>
    %110 = arith.mulf %56, %109 : vector<4x128xf32>
    %cst_21 = arith.constant dense<0.000000e+00> : vector<4xf32>
    %111 = vector.multi_reduction <add>, %110, %cst_21 [1] : vector<4x128xf32> to vector<4xf32>
    %112 = vector.shape_cast %111 : vector<4xf32> to vector<4x1xf32>
    %cst_22 = arith.constant 0.0322580636 : f32
    %113 = vector.broadcast %cst_22 : f32 to vector<4x1xf32>
    %114 = arith.mulf %112, %113 : vector<4x1xf32>
    %cst_23 = arith.constant 9.99999997E-7 : f32
    %115 = vector.broadcast %cst_23 : f32 to vector<4x1xf32>
    %116 = arith.addf %114, %115 : vector<4x1xf32>
    %117 = math.rsqrt %116 : vector<4x1xf32>
    %118 = vector.broadcast %117 : vector<4x1xf32> to vector<4x128xf32>
    %119 = vector.broadcast %108 : vector<1x128xf32> to vector<4x128xf32>
    %120 = arith.mulf %118, %119 : vector<4x128xf32>
    %121 = arith.addf %105, %120 : vector<4x128xf32>
    %c0_24 = arith.constant 0 : index
    %c0_25 = arith.constant 0 : index
    %122 = vector.load %arg2[%c0_24, %c0_25] : memref<1x128xf32, #tpu.memory_space<vmem>>, vector<1x128xf32>
    %123 = arith.mulf %55, %121 : vector<4x128xf32>
    %124 = vector.broadcast %122 : vector<1x128xf32> to vector<4x128xf32>
    %125 = arith.mulf %124, %123 : vector<4x128xf32>
    %c0_26 = arith.constant 0 : index
    %c0_27 = arith.constant 0 : index
    %126 = vector.load %arg3[%c0_26, %c0_27] : memref<1x128xf32, #tpu.memory_space<vmem>>, vector<1x128xf32>
    %127 = vector.broadcast %126 : vector<1x128xf32> to vector<4x128xf32>
    %128 = arith.addf %125, %127 : vector<4x128xf32>
    %c0_28 = arith.constant 0 : index
    %c0_29 = arith.constant 0 : index
    %129 = vector.load %arg5[%c0_28, %c0_29] : memref<4x128xf32, #tpu.memory_space<vmem>>, vector<4x128xf32>
    tpu.vector_store %arg5[%c0_28, %c0_29], %128 {strides = array<i32>} : memref<4x128xf32, #tpu.memory_space<vmem>>, vector<4x128xf32>,
    return
  }
  func.func @transform_0(%arg0: i32) -> (i32, i32) {
    %c0_i32 = arith.constant 0 : i32
    %c0_i32_0 = arith.constant 0 : i32
    return %arg0, %c0_i32 : i32, i32
  }
  func.func @transform_1(%arg0: i32) -> (i32, i32) {
    %c0_i32 = arith.constant 0 : i32
    %c0_i32_0 = arith.constant 0 : i32
    %c0_i32_1 = arith.constant 0 : i32
    return %c0_i32, %c0_i32_0 : i32, i32
  }
  func.func @transform_2(%arg0: i32) -> (i32, i32) {
    %c0_i32 = arith.constant 0 : i32
    %c0_i32_0 = arith.constant 0 : i32
    %c0_i32_1 = arith.constant 0 : i32
    return %c0_i32, %c0_i32_0 : i32, i32
  }
  func.func @transform_3(%arg0: i32) -> (i32, i32) {
    %c0_i32 = arith.constant 0 : i32
    %c0_i32_0 = arith.constant 0 : i32
    %c0_i32_1 = arith.constant 0 : i32
    return %c0_i32, %c0_i32_0 : i32, i32
  }
  func.func @transform_4(%arg0: i32) -> (i32, i32) {
    %c0_i32 = arith.constant 0 : i32
    %c0_i32_0 = arith.constant 0 : i32
    return %arg0, %c0_i32 : i32, i32
  }
}

</mosaic_0001>

<llo_original>
// kernel: tpu_custom_call.1
$region0: #{tpu_custom_call.1}
  #allocation0 [shape = 'u32[]', space=smem, size = 0x4, offset = 0x4, fixed_abs, tag = 'smem constant byte address 0x4 - core index']
  #allocation1 [shape = 'u32[144,128]{1,0:T(1,128)}', space=vmem, size = 0x12000, scoped, tag = 'internal scratch']
  %s0 = inlined_call_operand.hbm [shape: f32[4,128], index: 0, kind: input, shape index: {}]
  %s1 = inlined_call_operand.vmem [shape: f32[1,128], index: 1, kind: input, shape index: {}]
  %s2 = inlined_call_operand.vmem [shape: f32[1,128], index: 2, kind: input, shape index: {}]
  %s3 = inlined_call_operand.vmem [shape: f32[4,128], index: 3, kind: input, shape index: {}]
  %s4 = inlined_call_operand.hbm [shape: f32[4,128], index: 4, kind: output, shape index: {}]
  %s5 = sld [smem:[#allocation0]]
  $region30: #{tpu_custom_call.1} parent=0
    _
  %s7 = ssub.s32 1, %s5
  %s8 = scalar_select 0, %s7, %s5
  $region1: #{tpu_custom_call.1} parent=0
    #allocation2 [shape = 'u8[2048]{0}', space=vmem, size = 0x800, scoped, tag = 'input window, operand 0, single buffered']
    #allocation3 [shape = 's32[1]{0}', space=sflag, size = 0x4, scoped, tag = 'scoped memory for tpu_custom_call.1']
    #allocation4 [shape = 's32[1]{0}', space=sflag, size = 0x4, scoped, tag = 'scoped memory for tpu_custom_call.1']
    #allocation5 [shape = 'u8[2048]{0}', space=vmem, size = 0x800, scoped, tag = 'output window, operand 0, single buffered']
    %9 = vsyncpa [#allocation3], 0
    %10 = vsyncpa [#allocation4], 0
    // Predicated region
    $region2: #{tpu_custom_call.1} parent=1 // pred_check
      _
    $region3: #{tpu_custom_call.1} parent=1 // pred_check_branch
      %12 = sbr.rel (0) target = $region5
    $region4: #{tpu_custom_call.1} parent=1 // pred_region
      %s14 = ssub.s32 64, 64
      %15 = vsyncadd [#allocation3], %s14
      %s17 = sshll.u32 [#allocation2], 4
      %s18 = int_to_ptr.vmem [resolvable:$true] %s17
      %20 = dma.hbm_to_vmem [thread:$0]  %s0, 64, %s18, [#allocation3]
    $region5: #{tpu_custom_call.1} parent=1 // pred_fallthru
      _
    // Predicated region
    $region6: #{tpu_custom_call.1} parent=1 // pred_check
      _
    $region7: #{tpu_custom_call.1} parent=1 // pred_check_branch
      %22 = sbr.rel (0) target = $region9
    $region8: #{tpu_custom_call.1} parent=1 // pred_region
      _
    $region9: #{tpu_custom_call.1} parent=1 // pred_fallthru
      _
    // Predicated region
    $region10: #{tpu_custom_call.1} parent=1 // pred_check
      _
    $region11: #{tpu_custom_call.1} parent=1 // pred_check_branch
      %24 = sbr.rel (0) target = $region13
    $region12: #{tpu_custom_call.1} parent=1 // pred_region
      _
    $region13: #{tpu_custom_call.1} parent=1 // pred_fallthru
      _
    // Predicated region
    $region14: #{tpu_custom_call.1} parent=1 // pred_check
      _
    $region15: #{tpu_custom_call.1} parent=1 // pred_check_branch
      %26 = sbr.rel (0) target = $region17
    $region16: #{tpu_custom_call.1} parent=1 // pred_region
      _
    $region17: #{tpu_custom_call.1} parent=1 // pred_fallthru
      _
    // Predicated region
    $region18: #{tpu_custom_call.1} parent=1 // pred_check
      _
    $region19: #{tpu_custom_call.1} parent=1 // pred_check_branch
      %28 = sbr.rel (0) target = $region21
    $region20: #{tpu_custom_call.1} parent=1 // pred_region
      %29 = dma.done [#allocation3], 64
    $region21: #{tpu_custom_call.1} parent=1 // pred_fallthru
      _
    %v30 = vld [vmem:[#allocation2] sm:$0xf]
    %v31 = vld [vmem:[%s3] sm:$0xf]
    %v32 = vlaneseq
    %v33 = vshrl.u32 %v32, 7
    %v34 = vsub.s32 0, %v33
    %v35 = vrot.slane %v31, %v34
    %v36 = vmul.f32 %v30, %v35
    %vm37 = vcmask 1043456
    %v38 = vsel %vm37, %v36, 0.0
    %39 = vadd.xlane.f32.xlu0 %v38
    %v40 = vpop.xlane.xlu0 %39
    %v41 = vmul.f32 %v40, 0.03125
    %v42 = vmul.f32 %v41, %v35
    %v43 = vadd.f32 %v42, 0.0
    %v44 = vlaneseq
    %v45 = vshrl.u32 %v44, 7
    %v46 = vsub.s32 1, %v45
    %v47 = vrot.slane %v31, %v46
    %v48 = vmul.f32 %v30, %v47
    %v49 = vsel %vm37, %v48, 0.0
    %50 = vadd.xlane.f32.xlu0 %v49
    %v51 = vpop.xlane.xlu0 %50
    %v52 = vmul.f32 %v51, 0.03125
    %v53 = vmul.f32 %v52, %v47
    %v54 = vadd.f32 %v43, %v53
    %v55 = vlaneseq
    %v56 = vshrl.u32 %v55, 7
    %v57 = vsub.s32 2, %v56
    %v58 = vrot.slane %v31, %v57
    %v59 = vmul.f32 %v30, %v58
    %v60 = vsel %vm37, %v59, 0.0
    %61 = vadd.xlane.f32.xlu0 %v60
    %v62 = vpop.xlane.xlu0 %61
    %v63 = vmul.f32 %v62, 0.03125
    %v64 = vmul.f32 %v63, %v58
    %v65 = vadd.f32 %v54, %v64
    %v66 = vlaneseq
    %v67 = vshrl.u32 %v66, 7
    %v68 = vsub.s32 3, %v67
    %v69 = vrot.slane %v31, %v68
    %v70 = vmul.f32 %v30, %v69
    %v71 = vsel %vm37, %v70, 0.0
    %72 = vadd.xlane.f32.xlu0 %v71
    %v73 = vpop.xlane.xlu0 %72
    %v74 = vmul.f32 %v73, 0.03125
    %v75 = vmul.f32 %v74, %v69
    %v76 = vadd.f32 %v65, %v75
    %v77 = vsub.f32 %v30, %v76
    %v78 = vmul.f32 %v77, %v77
    %v79 = vmul.f32 %v78, %v35
    %v80 = vsel %vm37, %v79, 0.0
    %81 = vadd.xlane.f32.xlu0 %v80
    %v82 = vpop.xlane.xlu0 %81
    %v83 = vmul.f32 %v82, 0.032258064
    %v84 = vadd.f32 %v83, 1e-06
    %v85 = vrsqrt.pop %v84
    %v86 = vmul.f32 %v85, %v35
    %v87 = vadd.f32 %v86, 0.0
    %v88 = vmul.f32 %v78, %v47
    %v89 = vsel %vm37, %v88, 0.0
    %90 = vadd.xlane.f32.xlu0 %v89
    %v91 = vpop.xlane.xlu0 %90
    %v92 = vmul.f32 %v91, 0.032258064
    %v93 = vadd.f32 %v92, 1e-06
    %v94 = vrsqrt.pop %v93
    %v95 = vmul.f32 %v94, %v47
    %v96 = vadd.f32 %v87, %v95
    %v97 = vmul.f32 %v78, %v58
    %v98 = vsel %vm37, %v97, 0.0
    %99 = vadd.xlane.f32.xlu0 %v98
    %v100 = vpop.xlane.xlu0 %99
    %v101 = vmul.f32 %v100, 0.032258064
    %v102 = vadd.f32 %v101, 1e-06
    %v103 = vrsqrt.pop %v102
    %v104 = vmul.f32 %v103, %v58
    %v105 = vadd.f32 %v96, %v104
    %v106 = vmul.f32 %v78, %v69
    %v107 = vsel %vm37, %v106, 0.0
    %108 = vadd.xlane.f32.xlu0 %v107
    %v109 = vpop.xlane.xlu0 %108
    %v110 = vmul.f32 %v109, 0.032258064
    %v111 = vadd.f32 %v110, 1e-06
    %v112 = vrsqrt.pop %v111
    %v113 = vmul.f32 %v112, %v69
    %v114 = vadd.f32 %v105, %v113
    %v115 = vld [vmem:[%s1] sm:$0x1]
    %v116 = vmul.f32 %v77, %v114
    %v118 = vlaneseq
    %v119 = vshrl.u32 %v118, 7
    %v120 = vsub.s32 0, %v119
    %v121 = vrot.slane %v115, %v120
    %v123 = vmul.f32 %v121, %v116
    %v124 = vld [vmem:[%s2] sm:$0x1]
    %v126 = vlaneseq
    %v127 = vshrl.u32 %v126, 7
    %v128 = vsub.s32 0, %v127
    %v129 = vrot.slane %v124, %v128
    %v131 = vadd.f32 %v123, %v129
    %132 = vst [vmem:[#allocation5] sm:$0xf] %v131
    // Predicated region
    $region22: #{tpu_custom_call.1} parent=1 // pred_check
      _
    $region23: #{tpu_custom_call.1} parent=1 // pred_check_branch
      %134 = sbr.rel (0) target = $region25
    $region24: #{tpu_custom_call.1} parent=1 // pred_region
      %s136 = ssub.s32 64, 64
      %137 = vsyncadd [#allocation4], %s136
      %s139 = sshll.u32 [#allocation5], 4
      %s140 = int_to_ptr.vmem [resolvable:$true] %s139
      %142 = dma.vmem_to_hbm [thread:$0]  %s140, 64, %s4, [#allocation4]
    $region25: #{tpu_custom_call.1} parent=1 // pred_fallthru
      _
    // Predicated region
    $region26: #{tpu_custom_call.1} parent=1 // pred_check
      _
    $region27: #{tpu_custom_call.1} parent=1 // pred_check_branch
      %144 = sbr.rel (0) target = $region29
    $region28: #{tpu_custom_call.1} parent=1 // pred_region
      %145 = dma.done [#allocation4], 64
    $region29: #{tpu_custom_call.1} parent=1 // pred_fallthru
      _
    %146 = vsyncpa [#allocation3], 1
    %147 = vsyncpa [#allocation4], 1

</llo_original>
